<compile_context>
chip_gen: v6e
topology: v6e:2x2x1
jax: 0.10.0
libtpu: 0.0.40
codegen_flags: <defaults>
</compile_context>

<pallas_src>
import numpy as np
import jax
import jax.numpy as jnp
from jax.experimental import pallas as pl
from jax.experimental.pallas import tpu as pltpu

# ---------------------------------------------------------------------------
# Problem sizes (small, consistent with the module's forward)
# ---------------------------------------------------------------------------
N, C = 2, 4              # batch, nbands
H, W = 16, 16            # input spatial
KH, KW = 5, 5            # MTF kernel size
RATIO = 4                # pansharpening ratio
OFF = 3                  # subsample offset (the `3::ratio` in forward)

OH, OW = H - KH + 1, W - KW + 1                      # valid-conv output (12, 12)
HO = (OH - OFF + RATIO - 1) // RATIO                 # len(range(OFF, OH, RATIO)) = 3
WO = (OW - OFF + RATIO - 1) // RATIO                 # 3
NC = N * C                                           # 8 packed (n, c) stripes
LANES = NC * W                                       # 128 -> one full vreg of lanes
COUNT = float(N * C * HO * WO)                       # L1Loss 'mean' denominator
INV_COUNT = 1.0 / COUNT

# --- static invariants the kernel relies on (fail loudly if sizes change) ----
assert LANES == 128, "packing assumes exactly one vreg of lanes"
assert W & (W - 1) == 0 and RATIO & (RATIO - 1) == 0, "bitwise mask trick needs pow2"
assert 0 <= OFF < RATIO, "subsample offset must lie inside one stride group"
# selected col + max lane shift must stay inside the 16-lane channel stripe:
assert OFF + RATIO * (WO - 1) + (KW - 1) < W
# selected row + max sublane shift must stay inside the 16-row tile (no wrap):
assert OFF + RATIO * (HO - 1) + (KH - 1) < H
# label placement via pad/reshape must fit the tile:
assert WO * RATIO <= W and HO * RATIO <= H


# ---------------------------------------------------------------------------
# Pallas kernel: single invocation, whole batch lane-packed
# ---------------------------------------------------------------------------
def spectral_loss_kernel(x_ref, w_ref, y_ref, loss_ref):
    # x_ref: (H, 128)      f32  x_ref[i, (n*C+c)*W + j] = outputs[n, c, i, j]
    # w_ref: (KH*KW, 128)  f32  w_ref[p*KW+q, (n*C+c)*W + j] = w[c, p, q]
    # y_ref: (H, 128)      f32  labels at rows/cols OFF::RATIO, 0 elsewhere
    # loss_ref: (1, 1)     f32  SMEM scalar output
    x = x_ref[...]                                   # register-resident (2 vregs)

    # Subsample mask generated in-kernel (iota + compares); the L1 'mean'
    # 1/COUNT factor is folded into the mask value.
    row = jax.lax.broadcasted_iota(jnp.int32, (H, LANES), 0)
    lane = jax.lax.broadcasted_iota(jnp.int32, (H, LANES), 1)
    col = jnp.bitwise_and(lane, W - 1)               # column within channel stripe
    sel = ((jnp.bitwise_and(row, RATIO - 1) == OFF) & (row < OH)
           & (jnp.bitwise_and(col, RATIO - 1) == OFF) & (col < OW))
    mask = jnp.where(sel, INV_COUNT, 0.0).astype(jnp.float32)

    # Depthwise conv as 25 shifted multiply-adds; shifts on the XLU via roll.
    # conv[i, k*W+j] = sum_{p,q} x[n,c,i+p,j+q] * w[c,p,q] at all masked lanes
    # (roll wrap-around only touches rows >= OH / cols >= OW, which are masked).
    acc = jnp.zeros((H, LANES), jnp.float32)
    for q in range(KW):
        xq = x if q == 0 else pltpu.roll(x, shift=LANES - q, axis=1)      # lane+q
        for p in range(KH):
            xpq = xq if p == 0 else pltpu.roll(xq, shift=H - p, axis=0)   # row+p
            wv = w_ref[pl.ds(p * KW + q, 1), :]                           # (1, 128)
            acc = acc + xpq * wv

    loss_ref[0, 0] = jnp.sum(jnp.abs(acc - y_ref[...]) * mask)


# ---------------------------------------------------------------------------
# Factory: precompute the per-lane weight table once (MTF is fixed, like the
# frozen nn.Conv2d weight in the module), return a jitted loss function.
# ---------------------------------------------------------------------------
def make_spectral_loss_nocorr(mtf):
    """mtf: (KH, KW, C) float array, same layout as the PyTorch module's ctor arg."""
    kernel_np = np.moveaxis(np.asarray(mtf, np.float32), -1, 0)          # (C, KH, KW)
    # w_table[p*KW+q, (n*C+c)*W + j] = kernel[c, p, q]   -- built once, host-side
    w_rows = np.transpose(kernel_np, (1, 2, 0)).reshape(KH * KW, C)      # (25, C)
    w_table = jnp.asarray(
        np.tile(np.repeat(w_rows, W, axis=1), (1, N)).astype(np.float32))  # (25, 128)

    @jax.jit
    def loss_fn(outputs, labels):
        outputs = outputs.astype(jnp.float32)                 # (N, C, H, W)
        labels = labels.astype(jnp.float32)                   # (N, C, HO, WO)

        # lane-dense activation packing: (N,C,H,W) -> (H, N*C*W) = (16, 128)
        x_packed = jnp.transpose(outputs, (2, 0, 1, 3)).reshape(H, LANES)

        # labels placed at the subsampled conv positions via pure layout ops
        # (pad / reshape / transpose -- no XLA scatter).
        lab = labels.reshape(NC, HO, WO)
        y_w = jnp.pad(lab[..., None],
                      ((0, 0), (0, 0), (0, 0), (OFF, RATIO - 1 - OFF)))
        y_w = y_w.reshape(NC, HO, WO * RATIO)                  # cols OFF::RATIO
        y_w = jnp.pad(y_w, ((0, 0), (0, 0), (0, W - WO * RATIO)))
        y_h = jnp.pad(y_w[:, :, None, :],
                      ((0, 0), (0, 0), (OFF, RATIO - 1 - OFF), (0, 0)))
        y_h = y_h.reshape(NC, HO * RATIO, W)                   # rows OFF::RATIO
        y_h = jnp.pad(y_h, ((0, 0), (0, H - HO * RATIO), (0, 0)))
        y_packed = jnp.transpose(y_h, (1, 0, 2)).reshape(H, LANES)

        loss = pl.pallas_call(
            spectral_loss_kernel,
            out_shape=jax.ShapeDtypeStruct((1, 1), jnp.float32),
            in_specs=[
                pl.BlockSpec(memory_space=pltpu.MemorySpace.VMEM),  # x (8 KB)
                pl.BlockSpec(memory_space=pltpu.MemorySpace.VMEM),  # w (12.5 KB)
                pl.BlockSpec(memory_space=pltpu.MemorySpace.VMEM),  # y (8 KB)
            ],
            out_specs=pl.BlockSpec(memory_space=pltpu.MemorySpace.SMEM),
        )(x_packed, w_table, y_packed)
        return loss[0, 0]

    return loss_fn


# ---------------------------------------------------------------------------
# Pure-numpy reference (mirrors the PyTorch forward) for a correctness check
# ---------------------------------------------------------------------------
def reference_loss(x, w, y):
    x = np.asarray(x, np.float32)
    w = np.asarray(w, np.float32)   # (C, KH, KW)
    y = np.asarray(y, np.float32)
    conv = np.zeros((N, C, OH, OW), np.float32)
    for n in range(N):
        for c in range(C):
            for i in range(OH):
                for j in range(OW):
                    conv[n, c, i, j] = np.sum(x[n, c, i:i + KH, j:j + KW] * w[c])
    sub = conv[:, :, OFF::RATIO, OFF::RATIO]
    return np.mean(np.abs(sub - y))


if __name__ == "__main__":
    # Deterministic MTF kernel (Gaussian per band, normalized like an MTF filter),
    # same (KH, KW, C) layout the PyTorch module receives.
    coords = np.arange(KH) - KH // 2
    sigmas = np.array([1.0, 1.5, 2.0, 2.5], np.float32)
    mtf = np.stack(
        [np.exp(-(coords[:, None] ** 2 + coords[None, :] ** 2) / (2.0 * s ** 2))
         for s in sigmas], axis=-1)
    mtf = (mtf / mtf.sum(axis=(0, 1), keepdims=True)).astype(np.float32)

    loss_fn = make_spectral_loss_nocorr(mtf)

    key = jax.random.PRNGKey(0)
    k1, k2 = jax.random.split(key)
    outputs = jax.random.normal(k1, (N, C, H, W), dtype=jnp.float32)
    labels = jax.random.normal(k2, (N, C, HO, WO), dtype=jnp.float32)

    loss = jax.block_until_ready(loss_fn(outputs, labels))

    ref = reference_loss(np.asarray(outputs), np.moveaxis(mtf, -1, 0),
                         np.asarray(labels))
    np.testing.assert_allclose(np.asarray(loss), ref, rtol=1e-4, atol=1e-5)

    print("KERNEL_OK")
</pallas_src>

<mosaic_0001>
module attributes {stable_mosaic.version = 11 : i64} {
  func.func @spectral_loss_kernel(%arg0: memref<16x128xf32, #tpu.memory_space<vmem>>, %arg1: memref<25x128xf32, #tpu.memory_space<vmem>>, %arg2: memref<16x128xf32, #tpu.memory_space<vmem>>, %arg3: memref<1x1xf32, #tpu.memory_space<smem>>) attributes {dimension_semantics = [], scalar_prefetch = 0 : i64, scratch_operands = 0 : i64, tpu.core_type = #tpu.core_type<tc>} {
    %c0 = arith.constant 0 : index
    %c0_0 = arith.constant 0 : index
    %0 = vector.load %arg0[%c0, %c0_0] : memref<16x128xf32, #tpu.memory_space<vmem>>, vector<16x128xf32>
    %1 = tpu.iota {dimensions = array<i32: 0>} : vector<16x128xi32>
    %2 = tpu.iota {dimensions = array<i32: 1>} : vector<16x128xi32>
    %c15_i32 = arith.constant 15 : i32
    %3 = vector.broadcast %c15_i32 : i32 to vector<16x128xi32>
    %4 = arith.andi %2, %3 : vector<16x128xi32>
    %c3_i32 = arith.constant 3 : i32
    %5 = vector.broadcast %c3_i32 : i32 to vector<16x128xi32>
    %6 = arith.andi %1, %5 : vector<16x128xi32>
    %c3_i32_1 = arith.constant 3 : i32
    %7 = vector.broadcast %c3_i32_1 : i32 to vector<16x128xi32>
    %8 = arith.cmpi eq, %6, %7 : vector<16x128xi32>
    %c12_i32 = arith.constant 12 : i32
    %9 = vector.broadcast %c12_i32 : i32 to vector<16x128xi32>
    %10 = arith.cmpi slt, %1, %9 : vector<16x128xi32>
    %11 = arith.andi %8, %10 : vector<16x128xi1>
    %c3_i32_2 = arith.constant 3 : i32
    %12 = vector.broadcast %c3_i32_2 : i32 to vector<16x128xi32>
    %13 = arith.andi %4, %12 : vector<16x128xi32>
    %c3_i32_3 = arith.constant 3 : i32
    %14 = vector.broadcast %c3_i32_3 : i32 to vector<16x128xi32>
    %15 = arith.cmpi eq, %13, %14 : vector<16x128xi32>
    %16 = arith.andi %11, %15 : vector<16x128xi1>
    %c12_i32_4 = arith.constant 12 : i32
    %17 = vector.broadcast %c12_i32_4 : i32 to vector<16x128xi32>
    %18 = arith.cmpi slt, %4, %17 : vector<16x128xi32>
    %19 = arith.andi %16, %18 : vector<16x128xi1>
    %cst = arith.constant 0.013888889 : f32
    %cst_5 = arith.constant 0.000000e+00 : f32
    %20 = vector.broadcast %cst : f32 to vector<16x128xf32>
    %21 = vector.broadcast %cst_5 : f32 to vector<16x128xf32>
    %22 = arith.select %19, %20, %21 : vector<16x128xi1>, vector<16x128xf32>
    %cst_6 = arith.constant 0.000000e+00 : f32
    %23 = vector.broadcast %cst_6 : f32 to vector<16x128xf32>
    %c0_7 = arith.constant 0 : index
    %c0_8 = arith.constant 0 : index
    %24 = vector.load %arg1[%c0_7, %c0_8] : memref<25x128xf32, #tpu.memory_space<vmem>>, vector<1x128xf32>
    %25 = vector.broadcast %24 : vector<1x128xf32> to vector<16x128xf32>
    %26 = arith.mulf %0, %25 : vector<16x128xf32>
    %27 = arith.addf %23, %26 : vector<16x128xf32>
    %c15_i32_9 = arith.constant 15 : i32
    %28 = tpu.dynamic_rotate %0 by %c15_i32_9 dim 0 : vector<16x128xf32>, i32 -> vector<16x128xf32>
    %c5 = arith.constant 5 : index
    %c0_10 = arith.constant 0 : index
    %29 = vector.load %arg1[%c5, %c0_10] : memref<25x128xf32, #tpu.memory_space<vmem>>, vector<1x128xf32>
    %30 = vector.broadcast %29 : vector<1x128xf32> to vector<16x128xf32>
    %31 = arith.mulf %28, %30 : vector<16x128xf32>
    %32 = arith.addf %27, %31 : vector<16x128xf32>
    %c14_i32 = arith.constant 14 : i32
    %33 = tpu.dynamic_rotate %0 by %c14_i32 dim 0 : vector<16x128xf32>, i32 -> vector<16x128xf32>
    %c10 = arith.constant 10 : index
    %c0_11 = arith.constant 0 : index
    %34 = vector.load %arg1[%c10, %c0_11] : memref<25x128xf32, #tpu.memory_space<vmem>>, vector<1x128xf32>
    %35 = vector.broadcast %34 : vector<1x128xf32> to vector<16x128xf32>
    %36 = arith.mulf %33, %35 : vector<16x128xf32>
    %37 = arith.addf %32, %36 : vector<16x128xf32>
    %c13_i32 = arith.constant 13 : i32
    %38 = tpu.dynamic_rotate %0 by %c13_i32 dim 0 : vector<16x128xf32>, i32 -> vector<16x128xf32>
    %c15 = arith.constant 15 : index
    %c0_12 = arith.constant 0 : index
    %39 = vector.load %arg1[%c15, %c0_12] : memref<25x128xf32, #tpu.memory_space<vmem>>, vector<1x128xf32>
    %40 = vector.broadcast %39 : vector<1x128xf32> to vector<16x128xf32>
    %41 = arith.mulf %38, %40 : vector<16x128xf32>
    %42 = arith.addf %37, %41 : vector<16x128xf32>
    %c12_i32_13 = arith.constant 12 : i32
    %43 = tpu.dynamic_rotate %0 by %c12_i32_13 dim 0 : vector<16x128xf32>, i32 -> vector<16x128xf32>
    %c20 = arith.constant 20 : index
    %c0_14 = arith.constant 0 : index
    %44 = vector.load %arg1[%c20, %c0_14] : memref<25x128xf32, #tpu.memory_space<vmem>>, vector<1x128xf32>
    %45 = vector.broadcast %44 : vector<1x128xf32> to vector<16x128xf32>
    %46 = arith.mulf %43, %45 : vector<16x128xf32>
    %47 = arith.addf %42, %46 : vector<16x128xf32>
    %c127_i32 = arith.constant 127 : i32
    %48 = tpu.dynamic_rotate %0 by %c127_i32 dim 1 : vector<16x128xf32>, i32 -> vector<16x128xf32>
    %c1 = arith.constant 1 : index
    %c0_15 = arith.constant 0 : index
    %49 = vector.load %arg1[%c1, %c0_15] : memref<25x128xf32, #tpu.memory_space<vmem>>, vector<1x128xf32>
    %50 = vector.broadcast %49 : vector<1x128xf32> to vector<16x128xf32>
    %51 = arith.mulf %48, %50 : vector<16x128xf32>
    %52 = arith.addf %47, %51 : vector<16x128xf32>
    %c15_i32_16 = arith.constant 15 : i32
    %53 = tpu.dynamic_rotate %48 by %c15_i32_16 dim 0 : vector<16x128xf32>, i32 -> vector<16x128xf32>
    %c6 = arith.constant 6 : index
    %c0_17 = arith.constant 0 : index
    %54 = vector.load %arg1[%c6, %c0_17] : memref<25x128xf32, #tpu.memory_space<vmem>>, vector<1x128xf32>
    %55 = vector.broadcast %54 : vector<1x128xf32> to vector<16x128xf32>
    %56 = arith.mulf %53, %55 : vector<16x128xf32>
    %57 = arith.addf %52, %56 : vector<16x128xf32>
    %c14_i32_18 = arith.constant 14 : i32
    %58 = tpu.dynamic_rotate %48 by %c14_i32_18 dim 0 : vector<16x128xf32>, i32 -> vector<16x128xf32>
    %c11 = arith.constant 11 : index
    %c0_19 = arith.constant 0 : index
    %59 = vector.load %arg1[%c11, %c0_19] : memref<25x128xf32, #tpu.memory_space<vmem>>, vector<1x128xf32>
    %60 = vector.broadcast %59 : vector<1x128xf32> to vector<16x128xf32>
    %61 = arith.mulf %58, %60 : vector<16x128xf32>
    %62 = arith.addf %57, %61 : vector<16x128xf32>
    %c13_i32_20 = arith.constant 13 : i32
    %63 = tpu.dynamic_rotate %48 by %c13_i32_20 dim 0 : vector<16x128xf32>, i32 -> vector<16x128xf32>
    %c16 = arith.constant 16 : index
    %c0_21 = arith.constant 0 : index
    %64 = vector.load %arg1[%c16, %c0_21] : memref<25x128xf32, #tpu.memory_space<vmem>>, vector<1x128xf32>
    %65 = vector.broadcast %64 : vector<1x128xf32> to vector<16x128xf32>
    %66 = arith.mulf %63, %65 : vector<16x128xf32>
    %67 = arith.addf %62, %66 : vector<16x128xf32>
    %c12_i32_22 = arith.constant 12 : i32
    %68 = tpu.dynamic_rotate %48 by %c12_i32_22 dim 0 : vector<16x128xf32>, i32 -> vector<16x128xf32>
    %c21 = arith.constant 21 : index
    %c0_23 = arith.constant 0 : index
    %69 = vector.load %arg1[%c21, %c0_23] : memref<25x128xf32, #tpu.memory_space<vmem>>, vector<1x128xf32>
    %70 = vector.broadcast %69 : vector<1x128xf32> to vector<16x128xf32>
    %71 = arith.mulf %68, %70 : vector<16x128xf32>
    %72 = arith.addf %67, %71 : vector<16x128xf32>
    %c126_i32 = arith.constant 126 : i32
    %73 = tpu.dynamic_rotate %0 by %c126_i32 dim 1 : vector<16x128xf32>, i32 -> vector<16x128xf32>
    %c2 = arith.constant 2 : index
    %c0_24 = arith.constant 0 : index
    %74 = vector.load %arg1[%c2, %c0_24] : memref<25x128xf32, #tpu.memory_space<vmem>>, vector<1x128xf32>
    %75 = vector.broadcast %74 : vector<1x128xf32> to vector<16x128xf32>
    %76 = arith.mulf %73, %75 : vector<16x128xf32>
    %77 = arith.addf %72, %76 : vector<16x128xf32>
    %c15_i32_25 = arith.constant 15 : i32
    %78 = tpu.dynamic_rotate %73 by %c15_i32_25 dim 0 : vector<16x128xf32>, i32 -> vector<16x128xf32>
    %c7 = arith.constant 7 : index
    %c0_26 = arith.constant 0 : index
    %79 = vector.load %arg1[%c7, %c0_26] : memref<25x128xf32, #tpu.memory_space<vmem>>, vector<1x128xf32>
    %80 = vector.broadcast %79 : vector<1x128xf32> to vector<16x128xf32>
    %81 = arith.mulf %78, %80 : vector<16x128xf32>
    %82 = arith.addf %77, %81 : vector<16x128xf32>
    %c14_i32_27 = arith.constant 14 : i32
    %83 = tpu.dynamic_rotate %73 by %c14_i32_27 dim 0 : vector<16x128xf32>, i32 -> vector<16x128xf32>
    %c12 = arith.constant 12 : index
    %c0_28 = arith.constant 0 : index
    %84 = vector.load %arg1[%c12, %c0_28] : memref<25x128xf32, #tpu.memory_space<vmem>>, vector<1x128xf32>
    %85 = vector.broadcast %84 : vector<1x128xf32> to vector<16x128xf32>
    %86 = arith.mulf %83, %85 : vector<16x128xf32>
    %87 = arith.addf %82, %86 : vector<16x128xf32>
    %c13_i32_29 = arith.constant 13 : i32
    %88 = tpu.dynamic_rotate %73 by %c13_i32_29 dim 0 : vector<16x128xf32>, i32 -> vector<16x128xf32>
    %c17 = arith.constant 17 : index
    %c0_30 = arith.constant 0 : index
    %89 = vector.load %arg1[%c17, %c0_30] : memref<25x128xf32, #tpu.memory_space<vmem>>, vector<1x128xf32>
    %90 = vector.broadcast %89 : vector<1x128xf32> to vector<16x128xf32>
    %91 = arith.mulf %88, %90 : vector<16x128xf32>
    %92 = arith.addf %87, %91 : vector<16x128xf32>
    %c12_i32_31 = arith.constant 12 : i32
    %93 = tpu.dynamic_rotate %73 by %c12_i32_31 dim 0 : vector<16x128xf32>, i32 -> vector<16x128xf32>
    %c22 = arith.constant 22 : index
    %c0_32 = arith.constant 0 : index
    %94 = vector.load %arg1[%c22, %c0_32] : memref<25x128xf32, #tpu.memory_space<vmem>>, vector<1x128xf32>
    %95 = vector.broadcast %94 : vector<1x128xf32> to vector<16x128xf32>
    %96 = arith.mulf %93, %95 : vector<16x128xf32>
    %97 = arith.addf %92, %96 : vector<16x128xf32>
    %c125_i32 = arith.constant 125 : i32
    %98 = tpu.dynamic_rotate %0 by %c125_i32 dim 1 : vector<16x128xf32>, i32 -> vector<16x128xf32>
    %c3 = arith.constant 3 : index
    %c0_33 = arith.constant 0 : index
    %99 = vector.load %arg1[%c3, %c0_33] : memref<25x128xf32, #tpu.memory_space<vmem>>, vector<1x128xf32>
    %100 = vector.broadcast %99 : vector<1x128xf32> to vector<16x128xf32>
    %101 = arith.mulf %98, %100 : vector<16x128xf32>
    %102 = arith.addf %97, %101 : vector<16x128xf32>
    %c15_i32_34 = arith.constant 15 : i32
    %103 = tpu.dynamic_rotate %98 by %c15_i32_34 dim 0 : vector<16x128xf32>, i32 -> vector<16x128xf32>
    %c8 = arith.constant 8 : index
    %c0_35 = arith.constant 0 : index
    %104 = vector.load %arg1[%c8, %c0_35] : memref<25x128xf32, #tpu.memory_space<vmem>>, vector<1x128xf32>
    %105 = vector.broadcast %104 : vector<1x128xf32> to vector<16x128xf32>
    %106 = arith.mulf %103, %105 : vector<16x128xf32>
    %107 = arith.addf %102, %106 : vector<16x128xf32>
    %c14_i32_36 = arith.constant 14 : i32
    %108 = tpu.dynamic_rotate %98 by %c14_i32_36 dim 0 : vector<16x128xf32>, i32 -> vector<16x128xf32>
    %c13 = arith.constant 13 : index
    %c0_37 = arith.constant 0 : index
    %109 = vector.load %arg1[%c13, %c0_37] : memref<25x128xf32, #tpu.memory_space<vmem>>, vector<1x128xf32>
    %110 = vector.broadcast %109 : vector<1x128xf32> to vector<16x128xf32>
    %111 = arith.mulf %108, %110 : vector<16x128xf32>
    %112 = arith.addf %107, %111 : vector<16x128xf32>
    %c13_i32_38 = arith.constant 13 : i32
    %113 = tpu.dynamic_rotate %98 by %c13_i32_38 dim 0 : vector<16x128xf32>, i32 -> vector<16x128xf32>
    %c18 = arith.constant 18 : index
    %c0_39 = arith.constant 0 : index
    %114 = vector.load %arg1[%c18, %c0_39] : memref<25x128xf32, #tpu.memory_space<vmem>>, vector<1x128xf32>
    %115 = vector.broadcast %114 : vector<1x128xf32> to vector<16x128xf32>
    %116 = arith.mulf %113, %115 : vector<16x128xf32>
    %117 = arith.addf %112, %116 : vector<16x128xf32>
    %c12_i32_40 = arith.constant 12 : i32
    %118 = tpu.dynamic_rotate %98 by %c12_i32_40 dim 0 : vector<16x128xf32>, i32 -> vector<16x128xf32>
    %c23 = arith.constant 23 : index
    %c0_41 = arith.constant 0 : index
    %119 = vector.load %arg1[%c23, %c0_41] : memref<25x128xf32, #tpu.memory_space<vmem>>, vector<1x128xf32>
    %120 = vector.broadcast %119 : vector<1x128xf32> to vector<16x128xf32>
    %121 = arith.mulf %118, %120 : vector<16x128xf32>
    %122 = arith.addf %117, %121 : vector<16x128xf32>
    %c124_i32 = arith.constant 124 : i32
    %123 = tpu.dynamic_rotate %0 by %c124_i32 dim 1 : vector<16x128xf32>, i32 -> vector<16x128xf32>
    %c4 = arith.constant 4 : index
    %c0_42 = arith.constant 0 : index
    %124 = vector.load %arg1[%c4, %c0_42] : memref<25x128xf32, #tpu.memory_space<vmem>>, vector<1x128xf32>
    %125 = vector.broadcast %124 : vector<1x128xf32> to vector<16x128xf32>
    %126 = arith.mulf %123, %125 : vector<16x128xf32>
    %127 = arith.addf %122, %126 : vector<16x128xf32>
    %c15_i32_43 = arith.constant 15 : i32
    %128 = tpu.dynamic_rotate %123 by %c15_i32_43 dim 0 : vector<16x128xf32>, i32 -> vector<16x128xf32>
    %c9 = arith.constant 9 : index
    %c0_44 = arith.constant 0 : index
    %129 = vector.load %arg1[%c9, %c0_44] : memref<25x128xf32, #tpu.memory_space<vmem>>, vector<1x128xf32>
    %130 = vector.broadcast %129 : vector<1x128xf32> to vector<16x128xf32>
    %131 = arith.mulf %128, %130 : vector<16x128xf32>
    %132 = arith.addf %127, %131 : vector<16x128xf32>
    %c14_i32_45 = arith.constant 14 : i32
    %133 = tpu.dynamic_rotate %123 by %c14_i32_45 dim 0 : vector<16x128xf32>, i32 -> vector<16x128xf32>
    %c14 = arith.constant 14 : index
    %c0_46 = arith.constant 0 : index
    %134 = vector.load %arg1[%c14, %c0_46] : memref<25x128xf32, #tpu.memory_space<vmem>>, vector<1x128xf32>
    %135 = vector.broadcast %134 : vector<1x128xf32> to vector<16x128xf32>
    %136 = arith.mulf %133, %135 : vector<16x128xf32>
    %137 = arith.addf %132, %136 : vector<16x128xf32>
    %c13_i32_47 = arith.constant 13 : i32
    %138 = tpu.dynamic_rotate %123 by %c13_i32_47 dim 0 : vector<16x128xf32>, i32 -> vector<16x128xf32>
    %c19 = arith.constant 19 : index
    %c0_48 = arith.constant 0 : index
    %139 = vector.load %arg1[%c19, %c0_48] : memref<25x128xf32, #tpu.memory_space<vmem>>, vector<1x128xf32>
    %140 = vector.broadcast %139 : vector<1x128xf32> to vector<16x128xf32>
    %141 = arith.mulf %138, %140 : vector<16x128xf32>
    %142 = arith.addf %137, %141 : vector<16x128xf32>
    %c12_i32_49 = arith.constant 12 : i32
    %143 = tpu.dynamic_rotate %123 by %c12_i32_49 dim 0 : vector<16x128xf32>, i32 -> vector<16x128xf32>
    %c24 = arith.constant 24 : index
    %c0_50 = arith.constant 0 : index
    %144 = vector.load %arg1[%c24, %c0_50] : memref<25x128xf32, #tpu.memory_space<vmem>>, vector<1x128xf32>
    %145 = vector.broadcast %144 : vector<1x128xf32> to vector<16x128xf32>
    %146 = arith.mulf %143, %145 : vector<16x128xf32>
    %147 = arith.addf %142, %146 : vector<16x128xf32>
    %c0_51 = arith.constant 0 : index
    %c0_52 = arith.constant 0 : index
    %148 = vector.load %arg2[%c0_51, %c0_52] : memref<16x128xf32, #tpu.memory_space<vmem>>, vector<16x128xf32>
    %149 = arith.subf %147, %148 : vector<16x128xf32>
    %150 = math.absf %149 : vector<16x128xf32>
    %151 = arith.mulf %150, %22 : vector<16x128xf32>
    %152 = vector.shape_cast %151 : vector<16x128xf32> to vector<1x16x128xf32>
    %cst_53 = arith.constant dense<0.000000e+00> : vector<1xf32>
    %153 = vector.multi_reduction <add>, %152, %cst_53 [1, 2] : vector<1x16x128xf32> to vector<1xf32>
    %154 = vector.shape_cast %153 : vector<1xf32> to vector<1x1x1xf32>
    %155 = vector.extract %154[0, 0, 0] : f32 from vector<1x1x1xf32>
    %c0_54 = arith.constant 0 : index
    %c0_55 = arith.constant 0 : index
    %156 = memref.load %arg3[%c0_54, %c0_55] : memref<1x1xf32, #tpu.memory_space<smem>>
    memref.store %155, %arg3[%c0_54, %c0_55] : memref<1x1xf32, #tpu.memory_space<smem>>
    return
  }
}

</mosaic_0001>

<llo_original>
// kernel: loss_fn.1
$region0: #{loss_fn.1}
  #allocation0 [shape = 'u32[]', space=smem, size = 0x4, offset = 0x4, fixed_abs, tag = 'smem constant byte address 0x4 - core index']
  #allocation1 [shape = 'u32[144,128]{1,0:T(1,128)}', space=vmem, size = 0x12000, scoped, tag = 'internal scratch']
  %s0 = inlined_call_operand.vmem [shape: f32[16,128], index: 0, kind: input, shape index: {}]
  %s1 = inlined_call_operand.vmem [shape: f32[25,128], index: 1, kind: input, shape index: {}]
  %s2 = inlined_call_operand.vmem [shape: f32[16,128], index: 2, kind: input, shape index: {}]
  %s3 = inlined_call_operand.hbm [shape: f32[1,1], index: 3, kind: output, shape index: {}]
  %s4 = sld [smem:[#allocation0]]
  $region22: #{loss_fn.1} parent=0
    _
  %s6 = ssub.s32 1, %s4
  %s7 = scalar_select 0, %s6, %s4
  $region1: #{loss_fn.1} parent=0
    #allocation2 [shape = 'u8[512]{0}', space=smem, size = 0x200, scoped, tag = 'output window, operand 0, single buffered']
    #allocation3 [shape = 's32[1]{0}', space=sflag, size = 0x4, scoped, tag = 'scoped memory for loss_fn.1']
    %8 = vsyncpa [#allocation3], 0
    // Predicated region
    $region2: #{loss_fn.1} parent=1 // pred_check
      _
    $region3: #{loss_fn.1} parent=1 // pred_check_branch
      %10 = sbr.rel (0) target = $region5
    $region4: #{loss_fn.1} parent=1 // pred_region
      _
    $region5: #{loss_fn.1} parent=1 // pred_fallthru
      _
    // Predicated region
    $region6: #{loss_fn.1} parent=1 // pred_check
      _
    $region7: #{loss_fn.1} parent=1 // pred_check_branch
      %12 = sbr.rel (0) target = $region9
    $region8: #{loss_fn.1} parent=1 // pred_region
      _
    $region9: #{loss_fn.1} parent=1 // pred_fallthru
      _
    // Predicated region
    $region10: #{loss_fn.1} parent=1 // pred_check
      _
    $region11: #{loss_fn.1} parent=1 // pred_check_branch
      %14 = sbr.rel (0) target = $region13
    $region12: #{loss_fn.1} parent=1 // pred_region
      _
    $region13: #{loss_fn.1} parent=1 // pred_fallthru
      _
    %v15 = vld [vmem:[%s0] sm:$0xff]
    %v16 = vld [vmem:[%s0 + $0x8] sm:$0xff]
    %v17 = vlaneseq
    %v18 = vshrl.u32 %v17, 7
    %v19 = vadd.s32 %v18, 8
    %v20 = vlaneseq
    %v21 = vand.u32 %v20, 127
    %v22 = vand.u32 %v21, 15
    %v23 = vand.u32 %v18, 3
    %v24 = vand.u32 %v19, 3
    %vm25 = vcmp.eq.s32.totalorder %v23, 3
    %vm26 = vcmp.eq.s32.totalorder %v24, 3
    %vm27 = vcmp.lt.s32.totalorder %v18, 12
    %vm28 = vcmp.lt.s32.totalorder %v19, 12
    %vm29 = vmand %vm25, %vm27
    %vm30 = vmand %vm26, %vm28
    %v31 = vand.u32 %v22, 3
    %vm32 = vcmp.eq.s32.totalorder %v31, 3
    %vm33 = vmand %vm29, %vm32
    %vm34 = vmand %vm30, %vm32
    %vm35 = vcmp.lt.s32.totalorder %v22, 12
    %vm36 = vmand %vm33, %vm35
    %vm37 = vmand %vm34, %vm35
    %v38 = vsel %vm36, 0.013888889, 0.0
    %v39 = vsel %vm37, 0.013888889, 0.0
    %v40 = vld [vmem:[%s1] sm:$0x1]
    %v41 = vlaneseq
    %v42 = vshrl.u32 %v41, 7
    %v43 = vsub.s32 0, %v42
    %v44 = vrot.slane %v40, %v43
    %v45 = vmul.f32 %v15, %v44
    %v46 = vmul.f32 %v16, %v44
    %v47 = vadd.f32 %v45, 0.0
    %v48 = vadd.f32 %v46, 0.0
    %v49 = vrot.slane %v15, 1
    %v50 = vrot.slane %v16, 1
    %vm51 = vcmp.lt.s32.totalorder %v18, 7
    %v52 = vsel %vm51, %v49, %v50
    %v53 = vsel %vm51, %v50, %v49
    %v54 = vld [vmem:[%s1 + $0x5] sm:$0x1]
    %v55 = vlaneseq
    %v56 = vshrl.u32 %v55, 7
    %v57 = vsub.s32 0, %v56
    %v58 = vrot.slane %v54, %v57
    %v59 = vmul.f32 %v52, %v58
    %v60 = vmul.f32 %v53, %v58
    %v61 = vadd.f32 %v47, %v59
    %v62 = vadd.f32 %v48, %v60
    %v63 = vrot.slane %v15, 2
    %v64 = vrot.slane %v16, 2
    %vm65 = vcmp.lt.s32.totalorder %v18, 6
    %v66 = vsel %vm65, %v63, %v64
    %v67 = vsel %vm65, %v64, %v63
    %v68 = vld [vmem:[%s1 + $0xa] sm:$0x1]
    %v69 = vlaneseq
    %v70 = vshrl.u32 %v69, 7
    %v71 = vsub.s32 0, %v70
    %v72 = vrot.slane %v68, %v71
    %v73 = vmul.f32 %v66, %v72
    %v74 = vmul.f32 %v67, %v72
    %v75 = vadd.f32 %v61, %v73
    %v76 = vadd.f32 %v62, %v74
    %v77 = vrot.slane %v15, 3
    %v78 = vrot.slane %v16, 3
    %vm79 = vcmp.lt.s32.totalorder %v18, 5
    %v80 = vsel %vm79, %v77, %v78
    %v81 = vsel %vm79, %v78, %v77
    %v82 = vld [vmem:[%s1 + $0xf] sm:$0x1]
    %v83 = vlaneseq
    %v84 = vshrl.u32 %v83, 7
    %v85 = vsub.s32 0, %v84
    %v86 = vrot.slane %v82, %v85
    %v87 = vmul.f32 %v80, %v86
    %v88 = vmul.f32 %v81, %v86
    %v89 = vadd.f32 %v75, %v87
    %v90 = vadd.f32 %v76, %v88
    %v91 = vrot.slane %v15, 4
    %v92 = vrot.slane %v16, 4
    %vm93 = vcmp.lt.s32.totalorder %v18, 4
    %v94 = vsel %vm93, %v91, %v92
    %v95 = vsel %vm93, %v92, %v91
    %v96 = vld [vmem:[%s1 + $0x14] sm:$0x1]
    %v97 = vlaneseq
    %v98 = vshrl.u32 %v97, 7
    %v99 = vsub.s32 0, %v98
    %v100 = vrot.slane %v96, %v99
    %v101 = vmul.f32 %v94, %v100
    %v102 = vmul.f32 %v95, %v100
    %v103 = vadd.f32 %v89, %v101
    %v104 = vadd.f32 %v90, %v102
    %105 = vrot.lane.b32.xlu0 %v15, 127
    %v106 = vpop.permute.xlu0 %105
    %107 = vrot.lane.b32.xlu0 %v16, 127
    %v108 = vpop.permute.xlu0 %107
    %v109 = vld [vmem:[%s1 + $0x1] sm:$0x1]
    %v110 = vlaneseq
    %v111 = vshrl.u32 %v110, 7
    %v112 = vsub.s32 0, %v111
    %v113 = vrot.slane %v109, %v112
    %v114 = vmul.f32 %v106, %v113
    %v115 = vmul.f32 %v108, %v113
    %v116 = vadd.f32 %v103, %v114
    %v117 = vadd.f32 %v104, %v115
    %v118 = vrot.slane %v106, 1
    %v119 = vrot.slane %v108, 1
    %v120 = vsel %vm51, %v118, %v119
    %v121 = vsel %vm51, %v119, %v118
    %v122 = vld [vmem:[%s1 + $0x6] sm:$0x1]
    %v123 = vlaneseq
    %v124 = vshrl.u32 %v123, 7
    %v125 = vsub.s32 0, %v124
    %v126 = vrot.slane %v122, %v125
    %v127 = vmul.f32 %v120, %v126
    %v128 = vmul.f32 %v121, %v126
    %v129 = vadd.f32 %v116, %v127
    %v130 = vadd.f32 %v117, %v128
    %v131 = vrot.slane %v106, 2
    %v132 = vrot.slane %v108, 2
    %v133 = vsel %vm65, %v131, %v132
    %v134 = vsel %vm65, %v132, %v131
    %v135 = vld [vmem:[%s1 + $0xb] sm:$0x1]
    %v136 = vlaneseq
    %v137 = vshrl.u32 %v136, 7
    %v138 = vsub.s32 0, %v137
    %v139 = vrot.slane %v135, %v138
    %v140 = vmul.f32 %v133, %v139
    %v141 = vmul.f32 %v134, %v139
    %v142 = vadd.f32 %v129, %v140
    %v143 = vadd.f32 %v130, %v141
    %v144 = vrot.slane %v106, 3
    %v145 = vrot.slane %v108, 3
    %v146 = vsel %vm79, %v144, %v145
    %v147 = vsel %vm79, %v145, %v144
    %v148 = vld [vmem:[%s1 + $0x10] sm:$0x1]
    %v149 = vlaneseq
    %v150 = vshrl.u32 %v149, 7
    %v151 = vsub.s32 0, %v150
    %v152 = vrot.slane %v148, %v151
    %v153 = vmul.f32 %v146, %v152
    %v154 = vmul.f32 %v147, %v152
    %v155 = vadd.f32 %v142, %v153
    %v156 = vadd.f32 %v143, %v154
    %v157 = vrot.slane %v106, 4
    %v158 = vrot.slane %v108, 4
    %v159 = vsel %vm93, %v157, %v158
    %v160 = vsel %vm93, %v158, %v157
    %v161 = vld [vmem:[%s1 + $0x15] sm:$0x1]
    %v162 = vlaneseq
    %v163 = vshrl.u32 %v162, 7
    %v164 = vsub.s32 0, %v163
    %v165 = vrot.slane %v161, %v164
    %v166 = vmul.f32 %v159, %v165
    %v167 = vmul.f32 %v160, %v165
    %v168 = vadd.f32 %v155, %v166
    %v169 = vadd.f32 %v156, %v167
    %170 = vrot.lane.b32.xlu0 %v15, 126
    %v171 = vpop.permute.xlu0 %170
    %172 = vrot.lane.b32.xlu0 %v16, 126
    %v173 = vpop.permute.xlu0 %172
    %v174 = vld [vmem:[%s1 + $0x2] sm:$0x1]
    %v175 = vlaneseq
    %v176 = vshrl.u32 %v175, 7
    %v177 = vsub.s32 0, %v176
    %v178 = vrot.slane %v174, %v177
    %v179 = vmul.f32 %v171, %v178
    %v180 = vmul.f32 %v173, %v178
    %v181 = vadd.f32 %v168, %v179
    %v182 = vadd.f32 %v169, %v180
    %v183 = vrot.slane %v171, 1
    %v184 = vrot.slane %v173, 1
    %v185 = vsel %vm51, %v183, %v184
    %v186 = vsel %vm51, %v184, %v183
    %v187 = vld [vmem:[%s1 + $0x7] sm:$0x1]
    %v188 = vlaneseq
    %v189 = vshrl.u32 %v188, 7
    %v190 = vsub.s32 0, %v189
    %v191 = vrot.slane %v187, %v190
    %v192 = vmul.f32 %v185, %v191
    %v193 = vmul.f32 %v186, %v191
    %v194 = vadd.f32 %v181, %v192
    %v195 = vadd.f32 %v182, %v193
    %v196 = vrot.slane %v171, 2
    %v197 = vrot.slane %v173, 2
    %v198 = vsel %vm65, %v196, %v197
    %v199 = vsel %vm65, %v197, %v196
    %v200 = vld [vmem:[%s1 + $0xc] sm:$0x1]
    %v201 = vlaneseq
    %v202 = vshrl.u32 %v201, 7
    %v203 = vsub.s32 0, %v202
    %v204 = vrot.slane %v200, %v203
    %v205 = vmul.f32 %v198, %v204
    %v206 = vmul.f32 %v199, %v204
    %v207 = vadd.f32 %v194, %v205
    %v208 = vadd.f32 %v195, %v206
    %v209 = vrot.slane %v171, 3
    %v210 = vrot.slane %v173, 3
    %v211 = vsel %vm79, %v209, %v210
    %v212 = vsel %vm79, %v210, %v209
    %v213 = vld [vmem:[%s1 + $0x11] sm:$0x1]
    %v214 = vlaneseq
    %v215 = vshrl.u32 %v214, 7
    %v216 = vsub.s32 0, %v215
    %v217 = vrot.slane %v213, %v216
    %v218 = vmul.f32 %v211, %v217
    %v219 = vmul.f32 %v212, %v217
    %v220 = vadd.f32 %v207, %v218
    %v221 = vadd.f32 %v208, %v219
    %v222 = vrot.slane %v171, 4
    %v223 = vrot.slane %v173, 4
    %v224 = vsel %vm93, %v222, %v223
    %v225 = vsel %vm93, %v223, %v222
    %v226 = vld [vmem:[%s1 + $0x16] sm:$0x1]
    %v227 = vlaneseq
    %v228 = vshrl.u32 %v227, 7
    %v229 = vsub.s32 0, %v228
    %v230 = vrot.slane %v226, %v229
    %v231 = vmul.f32 %v224, %v230
    %v232 = vmul.f32 %v225, %v230
    %v233 = vadd.f32 %v220, %v231
    %v234 = vadd.f32 %v221, %v232
    %235 = vrot.lane.b32.xlu0 %v15, 125
    %v236 = vpop.permute.xlu0 %235
    %237 = vrot.lane.b32.xlu0 %v16, 125
    %v238 = vpop.permute.xlu0 %237
    %v239 = vld [vmem:[%s1 + $0x3] sm:$0x1]
    %v240 = vlaneseq
    %v241 = vshrl.u32 %v240, 7
    %v242 = vsub.s32 0, %v241
    %v243 = vrot.slane %v239, %v242
    %v244 = vmul.f32 %v236, %v243
    %v245 = vmul.f32 %v238, %v243
    %v246 = vadd.f32 %v233, %v244
    %v247 = vadd.f32 %v234, %v245
    %v248 = vrot.slane %v236, 1
    %v249 = vrot.slane %v238, 1
    %v250 = vsel %vm51, %v248, %v249
    %v251 = vsel %vm51, %v249, %v248
    %v252 = vld [vmem:[%s1 + $0x8] sm:$0x1]
    %v253 = vlaneseq
    %v254 = vshrl.u32 %v253, 7
    %v255 = vsub.s32 0, %v254
    %v256 = vrot.slane %v252, %v255
    %v257 = vmul.f32 %v250, %v256
    %v258 = vmul.f32 %v251, %v256
    %v259 = vadd.f32 %v246, %v257
    %v260 = vadd.f32 %v247, %v258
    %v261 = vrot.slane %v236, 2
    %v262 = vrot.slane %v238, 2
    %v263 = vsel %vm65, %v261, %v262
    %v264 = vsel %vm65, %v262, %v261
    %v265 = vld [vmem:[%s1 + $0xd] sm:$0x1]
    %v266 = vlaneseq
    %v267 = vshrl.u32 %v266, 7
    %v268 = vsub.s32 0, %v267
    %v269 = vrot.slane %v265, %v268
    %v270 = vmul.f32 %v263, %v269
    %v271 = vmul.f32 %v264, %v269
    %v272 = vadd.f32 %v259, %v270
    %v273 = vadd.f32 %v260, %v271
    %v274 = vrot.slane %v236, 3
    %v275 = vrot.slane %v238, 3
    %v276 = vsel %vm79, %v274, %v275
    %v277 = vsel %vm79, %v275, %v274
    %v278 = vld [vmem:[%s1 + $0x12] sm:$0x1]
    %v279 = vlaneseq
    %v280 = vshrl.u32 %v279, 7
    %v281 = vsub.s32 0, %v280
    %v282 = vrot.slane %v278, %v281
    %v283 = vmul.f32 %v276, %v282
    %v284 = vmul.f32 %v277, %v282
    %v285 = vadd.f32 %v272, %v283
    %v286 = vadd.f32 %v273, %v284
    %v287 = vrot.slane %v236, 4
    %v288 = vrot.slane %v238, 4
    %v289 = vsel %vm93, %v287, %v288
    %v290 = vsel %vm93, %v288, %v287
    %v291 = vld [vmem:[%s1 + $0x17] sm:$0x1]
    %v292 = vlaneseq
    %v293 = vshrl.u32 %v292, 7
    %v294 = vsub.s32 0, %v293
    %v295 = vrot.slane %v291, %v294
    %v296 = vmul.f32 %v289, %v295
    %v297 = vmul.f32 %v290, %v295
    %v298 = vadd.f32 %v285, %v296
    %v299 = vadd.f32 %v286, %v297
    %300 = vrot.lane.b32.xlu0 %v15, 124
    %v301 = vpop.permute.xlu0 %300
    %302 = vrot.lane.b32.xlu0 %v16, 124
    %v303 = vpop.permute.xlu0 %302
    %v304 = vld [vmem:[%s1 + $0x4] sm:$0x1]
    %v305 = vlaneseq
    %v306 = vshrl.u32 %v305, 7
    %v307 = vsub.s32 0, %v306
    %v308 = vrot.slane %v304, %v307
    %v309 = vmul.f32 %v301, %v308
    %v310 = vmul.f32 %v303, %v308
    %v311 = vadd.f32 %v298, %v309
    %v312 = vadd.f32 %v299, %v310
    %v313 = vrot.slane %v301, 1
    %v314 = vrot.slane %v303, 1
    %v315 = vsel %vm51, %v313, %v314
    %v316 = vsel %vm51, %v314, %v313
    %v317 = vld [vmem:[%s1 + $0x9] sm:$0x1]
    %v318 = vlaneseq
    %v319 = vshrl.u32 %v318, 7
    %v320 = vsub.s32 0, %v319
    %v321 = vrot.slane %v317, %v320
    %v322 = vmul.f32 %v315, %v321
    %v323 = vmul.f32 %v316, %v321
    %v324 = vadd.f32 %v311, %v322
    %v325 = vadd.f32 %v312, %v323
    %v326 = vrot.slane %v301, 2
    %v327 = vrot.slane %v303, 2
    %v328 = vsel %vm65, %v326, %v327
    %v329 = vsel %vm65, %v327, %v326
    %v330 = vld [vmem:[%s1 + $0xe] sm:$0x1]
    %v331 = vlaneseq
    %v332 = vshrl.u32 %v331, 7
    %v333 = vsub.s32 0, %v332
    %v334 = vrot.slane %v330, %v333
    %v335 = vmul.f32 %v328, %v334
    %v336 = vmul.f32 %v329, %v334
    %v337 = vadd.f32 %v324, %v335
    %v338 = vadd.f32 %v325, %v336
    %v339 = vrot.slane %v301, 3
    %v340 = vrot.slane %v303, 3
    %v341 = vsel %vm79, %v339, %v340
    %v342 = vsel %vm79, %v340, %v339
    %v343 = vld [vmem:[%s1 + $0x13] sm:$0x1]
    %v344 = vlaneseq
    %v345 = vshrl.u32 %v344, 7
    %v346 = vsub.s32 0, %v345
    %v347 = vrot.slane %v343, %v346
    %v348 = vmul.f32 %v341, %v347
    %v349 = vmul.f32 %v342, %v347
    %v350 = vadd.f32 %v337, %v348
    %v351 = vadd.f32 %v338, %v349
    %v352 = vrot.slane %v301, 4
    %v353 = vrot.slane %v303, 4
    %v354 = vsel %vm93, %v352, %v353
    %v355 = vsel %vm93, %v353, %v352
    %v356 = vld [vmem:[%s1 + $0x18] sm:$0x1]
    %v357 = vlaneseq
    %v358 = vshrl.u32 %v357, 7
    %v359 = vsub.s32 0, %v358
    %v360 = vrot.slane %v356, %v359
    %v361 = vmul.f32 %v354, %v360
    %v362 = vmul.f32 %v355, %v360
    %v363 = vadd.f32 %v350, %v361
    %v364 = vadd.f32 %v351, %v362
    %v365 = vld [vmem:[%s2] sm:$0xff]
    %v366 = vld [vmem:[%s2 + $0x8] sm:$0xff]
    %v367 = vsub.f32 %v363, %v365
    %v368 = vsub.f32 %v364, %v366
    %v369 = vand.u32 2147483647, %v367
    %v370 = vand.u32 2147483647, %v368
    %v371 = vmul.f32 %v369, %v38
    %v372 = vmul.f32 %v370, %v39
    %v373 = vadd.f32 %v371, %v372
    %374 = vadd.xlane.f32.xlu0 %v373
    %v375 = vpop.xlane.xlu0 %374
    %v376 = vrot.slane %v375, 4
    %v377 = vadd.f32 %v375, %v376
    %v378 = vrot.slane %v377, 2
    %v379 = vadd.f32 %v377, %v378
    %v380 = vrot.slane %v379, 1
    %v381 = vadd.f32 %v379, %v380
    %s382 = vtos %v381
    %s383 = scalar_lea.smem [#allocation2], 0
    %384 = sst [smem:[%s383]] %s382
    // Predicated region
    $region14: #{loss_fn.1} parent=1 // pred_check
      _
    $region15: #{loss_fn.1} parent=1 // pred_check_branch
      %386 = sbr.rel (0) target = $region17
    $region16: #{loss_fn.1} parent=1 // pred_region
      %s388 = ssub.s32 16, 16
      %389 = vsyncadd [#allocation3], %s388
      %392 = dma.smem_to_hbm [#allocation2], 16, %s3, [#allocation3]
    $region17: #{loss_fn.1} parent=1 // pred_fallthru
      _
    // Predicated region
    $region18: #{loss_fn.1} parent=1 // pred_check
      _
    $region19: #{loss_fn.1} parent=1 // pred_check_branch
      %394 = sbr.rel (0) target = $region21
    $region20: #{loss_fn.1} parent=1 // pred_region
      %395 = dma.done [#allocation3], 16
    $region21: #{loss_fn.1} parent=1 // pred_fallthru
      _
    %396 = sfence
    %397 = vsyncpa [#allocation3], 1

</llo_original>
